<compile_context>
chip_gen: v5e
topology: v5e:2x2
jax: 0.10.0
libtpu: 0.0.40
codegen_flags: <defaults>
</compile_context>

<pallas_src>
import math
import functools

import jax
import jax.numpy as jnp
from jax.experimental import pallas as pl
from jax.experimental.pallas import tpu as pltpu


def _round_up(x, m):
    return ((x + m - 1) // m) * m


_VMEM_LIMIT = 32 * 1024 * 1024  # explicit: safe on v5e/v6e (128 MiB) and v7x (64 MiB)


# ----------------------------------------------------------------------------
# Kernel 1: CenterNet focal loss (with _sigmoid clamp), gridded reduction
# ----------------------------------------------------------------------------
def _focal_kernel(pred_ref, gt_ref, out_ref, acc_ref):
    i = pl.program_id(0)

    @pl.when(i == 0)
    def _():
        acc_ref[0] = jnp.float32(0.0)
        acc_ref[1] = jnp.float32(0.0)
        acc_ref[2] = jnp.float32(0.0)

    x = pred_ref[...].astype(jnp.float32)
    gt = gt_ref[...].astype(jnp.float32)

    # log-sigmoid identities (stable):  log p = -softplus(-x),  log(1-p) = -x - softplus(-x)
    sp = jnp.maximum(-x, 0.0) + jnp.log(1.0 + jnp.exp(-jnp.abs(x)))
    logp_raw = -sp
    log1mp_raw = -x - sp
    eps = 1e-4
    log_eps = math.log(eps)
    log_1meps = math.log(1.0 - eps)
    # clamp reproduces _sigmoid(): p = clip(sigmoid(x), 1e-4, 1-1e-4)
    logp = jnp.clip(logp_raw, log_eps, log_1meps)
    log1mp = jnp.clip(log1mp_raw, log_eps, log_1meps)
    p = jnp.clip(jnp.exp(logp_raw), eps, 1.0 - eps)

    pos = (gt == 1.0).astype(jnp.float32)        # faithful to CenterNet gt.eq(1)
    neg = (gt < 1.0).astype(jnp.float32)         # padded gt == 2.0 -> pos=0, neg=0
    neg_w = (1.0 - gt) ** 4

    pos_loss = logp * (1.0 - p) ** 2 * pos
    neg_loss = log1mp * p * p * neg_w * neg

    acc_ref[0] += jnp.sum(pos_loss)
    acc_ref[1] += jnp.sum(neg_loss)
    acc_ref[2] += jnp.sum(pos)

    @pl.when(i == pl.num_programs(0) - 1)
    def _():
        out_ref[0] = acc_ref[0]
        out_ref[1] = acc_ref[1]
        out_ref[2] = acc_ref[2]


def focal_loss(pred_hm_nchw, gt_hm_nchw):
    # TODO(synk): for v7x (2 TCs) emit per-core partial sums with a leading
    # "parallel" grid axis and finish the sum in JAX; single-core reduction here.
    LANES = 512                                   # lane-dense multiple of 128
    total = int(pred_hm_nchw.size)
    rows = _round_up(total, LANES) // LANES
    block_rows = 512 if rows >= 512 else _round_up(rows, 8)
    padded_rows = _round_up(rows, block_rows)
    padded_total = padded_rows * LANES

    p_flat = jnp.pad(pred_hm_nchw.reshape(-1).astype(jnp.float32),
                     (0, padded_total - total))
    # pad gt with 2.0 -> neither a positive nor a negative -> contributes nothing
    g_flat = jnp.pad(gt_hm_nchw.reshape(-1).astype(jnp.float32),
                     (0, padded_total - total), constant_values=2.0)
    p2 = p_flat.reshape(padded_rows, LANES)
    g2 = g_flat.reshape(padded_rows, LANES)

    grid = (padded_rows // block_rows,)
    sums = pl.pallas_call(
        _focal_kernel,
        out_shape=jax.ShapeDtypeStruct((3,), jnp.float32),
        grid_spec=pltpu.PrefetchScalarGridSpec(
            num_scalar_prefetch=0,
            grid=grid,
            in_specs=[pl.BlockSpec((block_rows, LANES), lambda i: (i, 0)),
                      pl.BlockSpec((block_rows, LANES), lambda i: (i, 0))],
            out_specs=pl.BlockSpec(memory_space=pltpu.MemorySpace.SMEM),
            scratch_shapes=[pltpu.SMEM((3,), jnp.float32)],
        ),
        compiler_params=pltpu.CompilerParams(
            dimension_semantics=("arbitrary",),
            vmem_limit_bytes=_VMEM_LIMIT,
        ),
    )(p2, g2)

    pos_sum, neg_sum, num_pos = sums[0], sums[1], sums[2]
    return jnp.where(num_pos == 0,
                     -neg_sum,
                     -(pos_sum + neg_sum) / jnp.maximum(num_pos, 1.0))


# ----------------------------------------------------------------------------
# Kernel 2: fused head losses
#   - masked L1 for the wh and reg heads (lane-dense channels x N slab)
#   - id head: L2-normalize * emb_scale, classifier matmul tiled over nID with
#     online log-sum-exp, masked cross-entropy (ignore_index = -1)
# ----------------------------------------------------------------------------
def _head_kernel(pred_ref, tgt_ref, mask_ref, feat_ref, label_ref, w_ref, b_ref,
                 out_ref, featn_ref, m_ref, l_ref, lab_ref,
                 *, emb_scale, c_wh, c_reg):
    i = pl.program_id(0)
    nt = pl.num_programs(0)
    tile_n = w_ref.shape[1]

    @pl.when(i == 0)
    def _():
        # normalize the gathered id features once, cache as bf16 for the MXU
        f = feat_ref[...].astype(jnp.float32)
        norm = jnp.sqrt(jnp.sum(f * f, axis=-1, keepdims=True))
        featn_ref[...] = ((emb_scale * f) / jnp.maximum(norm, 1e-12)).astype(jnp.bfloat16)
        m_ref[...] = jnp.full_like(m_ref, -jnp.inf)
        l_ref[...] = jnp.zeros_like(l_ref)
        lab_ref[...] = jnp.zeros_like(lab_ref)

    # ---- id head: one nID tile per grid step (online LSE) ----
    logits = jnp.dot(featn_ref[...], w_ref[...],
                     preferred_element_type=jnp.float32) + b_ref[...]
    labels = label_ref[...]                                     # (N, 1) int32
    col = jax.lax.broadcasted_iota(jnp.int32, logits.shape, 1) + i * tile_n
    hit = col == labels
    lab_ref[...] = lab_ref[...] + jnp.sum(jnp.where(hit, logits, 0.0),
                                          axis=-1, keepdims=True)
    tile_max = jnp.max(logits, axis=-1, keepdims=True)
    m_new = jnp.maximum(m_ref[...], tile_max)
    alpha = jnp.exp(m_ref[...] - m_new)
    l_ref[...] = alpha * l_ref[...] + jnp.sum(jnp.exp(logits - m_new),
                                              axis=-1, keepdims=True)
    m_ref[...] = m_new

    @pl.when(i == nt - 1)
    def _():
        # ---- wh / reg masked L1 (tiny, lane-dense channels x N) ----
        p = pred_ref[...].astype(jnp.float32)
        t = tgt_ref[...].astype(jnp.float32)
        msk = mask_ref[...].astype(jnp.float32)                 # (1, N) broadcast
        diff = jnp.abs(p * msk - t * msk)
        out_ref[0] = jnp.sum(diff[:c_wh, :])
        out_ref[1] = jnp.sum(diff[c_wh:c_wh + c_reg, :])
        out_ref[2] = jnp.sum(msk)
        # ---- id cross-entropy finalize ----
        valid = (label_ref[...] >= 0).astype(jnp.float32)       # reg_mask>0 & id!=-1
        ce = (jnp.log(l_ref[...]) + m_ref[...]) - lab_ref[...]
        out_ref[3] = jnp.sum(ce * valid)
        out_ref[4] = jnp.sum(valid)


def _gather_head(feat_nchw, ind):
    # gather K spatial locations WITHOUT materializing the full NHWC transpose:
    # (B, C, H, W) -> (B, C, H*W) -> take_along_axis -> (B, C, K)
    B, C, H, W = feat_nchw.shape
    flat = feat_nchw.reshape(B, C, H * W)
    return jnp.take_along_axis(flat, ind[:, None, :], axis=2)


def head_losses(wh_out, reg_out, id_out, batch, w_t, b, emb_scale):
    ind = batch['ind']
    reg_mask = batch['reg_mask']
    ids = batch['ids']
    B, K = ind.shape
    N = B * K

    wh_p = _gather_head(wh_out, ind)       # (B, 2, K)
    rg_p = _gather_head(reg_out, ind)      # (B, 2, K)
    id_p = _gather_head(id_out, ind)       # (B, D, K)

    # --- lane-dense (channels, N_pad) slabs for the L1 heads ---
    NK_pad = _round_up(N, 128)

    def pred_to_cn(x_bck):                 # (B, C, K) -> (C, N_pad)
        C = x_bck.shape[1]
        x = jnp.transpose(x_bck, (1, 0, 2)).reshape(C, N)
        return jnp.pad(x.astype(jnp.float32), ((0, 0), (0, NK_pad - N)))

    def tgt_to_cn(t_bkc):                  # (B, K, C) -> (C, N_pad)
        C = t_bkc.shape[2]
        x = jnp.transpose(t_bkc, (2, 0, 1)).reshape(C, N)
        return jnp.pad(x.astype(jnp.float32), ((0, 0), (0, NK_pad - N)))

    preds = jnp.concatenate([pred_to_cn(wh_p), pred_to_cn(rg_p)], axis=0)      # (4, NK_pad)
    tgts = jnp.concatenate([tgt_to_cn(batch['wh']), tgt_to_cn(batch['reg'])], axis=0)
    mask_row = jnp.pad(reg_mask.reshape(1, N).astype(jnp.float32),
                       ((0, 0), (0, NK_pad - N)))                              # (1, NK_pad)

    # --- id features / labels ---
    D = id_p.shape[1]
    N_pad = _round_up(N, 8)
    feat = jnp.transpose(id_p, (0, 2, 1)).reshape(N, D).astype(jnp.float32)
    feat = jnp.pad(feat, ((0, N_pad - N), (0, 0)))
    labels = jnp.where((reg_mask.reshape(N) > 0) & (ids.reshape(N) != -1),
                       ids.reshape(N), -1).astype(jnp.int32)
    labels = jnp.pad(labels, (0, N_pad - N), constant_values=-1).reshape(N_pad, 1)

    # --- classifier weight, padded + tiled over nID ---
    nID = w_t.shape[1]
    nID_pad = _round_up(nID, 128)
    # 256-wide tiles match the v6e/v7x MXU; 128 works everywhere (v5e MXU width).
    tile_n = 256 if (nID_pad % 256 == 0) else 128
    w_p = jnp.pad(w_t.astype(jnp.float32), ((0, 0), (0, nID_pad - nID))
                  ).astype(jnp.bfloat16)                                        # (D, nID_pad)
    b_p = jnp.pad(b.reshape(1, nID).astype(jnp.float32),
                  ((0, 0), (0, nID_pad - nID)), constant_values=-1e30)          # (1, nID_pad)

    grid = (nID_pad // tile_n,)
    sums = pl.pallas_call(
        functools.partial(_head_kernel, emb_scale=emb_scale, c_wh=2, c_reg=2),
        out_shape=jax.ShapeDtypeStruct((5,), jnp.float32),
        grid_spec=pltpu.PrefetchScalarGridSpec(
            num_scalar_prefetch=0,
            grid=grid,
            in_specs=[
                pl.BlockSpec((4, NK_pad), lambda i: (0, 0)),      # preds (wh|reg)
                pl.BlockSpec((4, NK_pad), lambda i: (0, 0)),      # targets (wh|reg)
                pl.BlockSpec((1, NK_pad), lambda i: (0, 0)),      # reg_mask
                pl.BlockSpec((N_pad, D), lambda i: (0, 0)),       # id features
                pl.BlockSpec((N_pad, 1), lambda i: (0, 0)),       # labels (-1 = ignore)
                pl.BlockSpec((D, tile_n), lambda i: (0, i)),      # classifier weight tile
                pl.BlockSpec((1, tile_n), lambda i: (0, i)),      # classifier bias tile
            ],
            out_specs=pl.BlockSpec(memory_space=pltpu.MemorySpace.SMEM),
            scratch_shapes=[
                pltpu.VMEM((N_pad, D), jnp.bfloat16),             # normalized feat cache
                pltpu.VMEM((N_pad, 1), jnp.float32),              # running max
                pltpu.VMEM((N_pad, 1), jnp.float32),              # running sum(exp)
                pltpu.VMEM((N_pad, 1), jnp.float32),              # label logit
            ],
        ),
        compiler_params=pltpu.CompilerParams(
            dimension_semantics=("arbitrary",),
            vmem_limit_bytes=_VMEM_LIMIT,
        ),
    )(preds, tgts, mask_row, feat, labels, w_p, b_p)

    wh_num, reg_num, msum, ce_sum, valid_sum = sums[0], sums[1], sums[2], sums[3], sums[4]
    # RegL1Loss divides by the mask expanded over the 2 channels (+1e-4)
    wh_loss = wh_num / (2.0 * msum + 1e-4)
    off_loss = reg_num / (2.0 * msum + 1e-4)
    # TODO(synk): PyTorch CE with zero valid rows gives NaN; we return 0-safe mean.
    id_loss = ce_sum / jnp.maximum(valid_sum, 1.0)
    return wh_loss, off_loss, id_loss


# ----------------------------------------------------------------------------
# MotLoss forward
# ----------------------------------------------------------------------------
class Opt:
    num_stacks = 1
    mse_loss = False
    reg_loss = 'l1'
    dense_wh = False
    norm_wh = False
    cat_spec_wh = False
    reg_offset = True
    hm_weight = 1.0
    wh_weight = 0.1
    off_weight = 1.0
    id_weight = 1.0
    id_loss = 'ce'
    multi_loss = 'uncertainty'
    nID = 64
    reid_dim = 32


def mot_loss_forward(params, outputs, batch, opt):
    hm_loss = wh_loss = off_loss = id_loss = 0.0
    emb_scale = math.sqrt(2) * math.log(opt.nID - 1)
    for s in range(opt.num_stacks):
        output = outputs[s]
        # not opt.mse_loss -> _sigmoid + FocalLoss (sigmoid/clamp fused in kernel)
        hm_loss = hm_loss + focal_loss(output['hm'], batch['hm']) / opt.num_stacks
        wl, ol, il = head_losses(output['wh'], output['reg'], output['id'],
                                 batch, params['cls_w_t'], params['cls_b'], emb_scale)
        if opt.wh_weight > 0:
            wh_loss = wh_loss + wl / opt.num_stacks
        if opt.reg_offset and opt.off_weight > 0:
            off_loss = off_loss + ol / opt.num_stacks
        if opt.id_weight > 0:
            id_loss = id_loss + il

    det_loss = opt.hm_weight * hm_loss + opt.wh_weight * wh_loss + opt.off_weight * off_loss
    s_det, s_id = params['s_det'], params['s_id']
    if opt.multi_loss == 'uncertainty':
        loss = jnp.exp(-s_det) * det_loss + jnp.exp(-s_id) * id_loss + (s_det + s_id)
        loss = loss * 0.5
    else:
        loss = det_loss + 0.1 * id_loss

    loss_stats = {'loss': loss, 'hm_loss': hm_loss, 'wh_loss': wh_loss,
                  'off_loss': off_loss, 'id_loss': id_loss}
    # TODO(synk): PyTorch returns the dynamically-shaped ids[reg_mask>0]; JAX needs
    # static shapes, so return a fixed-size version with invalid slots set to -1.
    id_target = jnp.where(batch['reg_mask'].reshape(-1) > 0,
                          batch['ids'].reshape(-1), -1)
    return loss, loss_stats, id_target


# ----------------------------------------------------------------------------
if __name__ == "__main__":
    key = jax.random.PRNGKey(0)
    B, C_hm, H, W = 2, 1, 16, 16
    K, D, nID = 8, 32, 64

    opt = Opt()
    opt.nID = nID
    opt.reid_dim = D

    ks = jax.random.split(key, 12)
    outputs = [{
        'hm':  jax.random.normal(ks[0], (B, C_hm, H, W), jnp.float32),
        'wh':  jax.random.normal(ks[1], (B, 2, H, W), jnp.float32),
        'reg': jax.random.normal(ks[2], (B, 2, H, W), jnp.float32),
        'id':  jax.random.normal(ks[3], (B, D, H, W), jnp.float32),
    }]

    ind = jax.random.randint(ks[4], (B, K), 0, H * W).astype(jnp.int32)
    reg_mask = (jax.lax.broadcasted_iota(jnp.int32, (B, K), 1) < 5).astype(jnp.float32)
    ids = jax.random.randint(ks[5], (B, K), 0, nID).astype(jnp.int32)
    ids = ids.at[0, 1].set(-1)                       # one ignored label

    hm_gt = jax.random.uniform(ks[6], (B, C_hm, H, W), jnp.float32, 0.0, 0.9)
    hm_gt = hm_gt.at[0, 0, 3, 5].set(1.0).at[1, 0, 7, 9].set(1.0)   # exact peaks

    batch = {
        'hm': hm_gt,
        'reg_mask': reg_mask,
        'ind': ind,
        'wh':  jax.random.uniform(ks[7], (B, K, 2), jnp.float32, 0.0, 4.0),
        'reg': jax.random.uniform(ks[8], (B, K, 2), jnp.float32, 0.0, 1.0),
        'ids': ids,
    }

    # Deterministic parameter init (nn.Linear(emb_dim, nID) + uncertainty weights).
    w = jax.random.normal(ks[9], (nID, D), jnp.float32) * 0.01
    b = jnp.zeros((nID,), jnp.float32)
    params = {
        'cls_w_t': w.T,                              # (D, nID) for x @ W^T + b
        'cls_b': b,
        's_det': jnp.asarray(-1.85, jnp.float32),
        's_id':  jnp.asarray(-1.05, jnp.float32),
    }

    loss, stats, id_target = mot_loss_forward(params, outputs, batch, opt)
    jax.block_until_ready(loss)
    jax.block_until_ready(id_target)
    print("KERNEL_OK")
</pallas_src>

<mosaic_0001>
module attributes {stable_mosaic.version = 11 : i64} {
  func.func @_focal_kernel(%arg0: i32, %arg1: memref<8x512xf32, #tpu.memory_space<vmem>>, %arg2: memref<8x512xf32, #tpu.memory_space<vmem>>, %arg3: memref<3xf32, #tpu.memory_space<smem>>, %arg4: memref<3xf32, #tpu.memory_space<smem>>) attributes {dimension_semantics = [#tpu.dimension_semantics<arbitrary>], iteration_bounds = array<i64: 1>, scalar_prefetch = 0 : i64, scratch_operands = 1 : i64, tpu.core_type = #tpu.core_type<tc>, window_params = [{transform_indices = @transform_0, window_bounds = array<i64: 8, 512>}, {transform_indices = @transform_1, window_bounds = array<i64: 8, 512>}, {transform_indices = @transform_2, window_bounds = array<i64: 3>}]} {
    %c0_i32 = arith.constant 0 : i32
    %0 = arith.cmpi eq, %arg0, %c0_i32 : i32
    %1 = arith.extui %0 : i1 to i32
    %c0_i32_0 = arith.constant 0 : i32
    %2 = arith.cmpi ne, %1, %c0_i32_0 : i32
    scf.if %2 {
      %cst_28 = arith.constant 0.000000e+00 : f32
      %c0_29 = arith.constant 0 : index
      %80 = memref.load %arg4[%c0_29] : memref<3xf32, #tpu.memory_space<smem>>
      memref.store %cst_28, %arg4[%c0_29] : memref<3xf32, #tpu.memory_space<smem>>
      %cst_30 = arith.constant 0.000000e+00 : f32
      %c1_31 = arith.constant 1 : index
      %81 = memref.load %arg4[%c1_31] : memref<3xf32, #tpu.memory_space<smem>>
      memref.store %cst_30, %arg4[%c1_31] : memref<3xf32, #tpu.memory_space<smem>>
      %cst_32 = arith.constant 0.000000e+00 : f32
      %c2_33 = arith.constant 2 : index
      %82 = memref.load %arg4[%c2_33] : memref<3xf32, #tpu.memory_space<smem>>
      memref.store %cst_32, %arg4[%c2_33] : memref<3xf32, #tpu.memory_space<smem>>
    } else {
    }
    %c0 = arith.constant 0 : index
    %c0_1 = arith.constant 0 : index
    %3 = vector.load %arg1[%c0, %c0_1] : memref<8x512xf32, #tpu.memory_space<vmem>>, vector<8x512xf32>
    %c0_2 = arith.constant 0 : index
    %c0_3 = arith.constant 0 : index
    %4 = vector.load %arg2[%c0_2, %c0_3] : memref<8x512xf32, #tpu.memory_space<vmem>>, vector<8x512xf32>
    %cst = arith.constant 0.000000e+00 : f32
    %5 = vector.broadcast %cst : f32 to vector<8x512xf32>
    %6 = arith.subf %5, %3 : vector<8x512xf32>
    %cst_4 = arith.constant 0.000000e+00 : f32
    %7 = vector.broadcast %cst_4 : f32 to vector<8x512xf32>
    %8 = arith.maximumf %6, %7 : vector<8x512xf32>
    %9 = math.absf %3 : vector<8x512xf32>
    %cst_5 = arith.constant 0.000000e+00 : f32
    %10 = vector.broadcast %cst_5 : f32 to vector<8x512xf32>
    %11 = arith.subf %10, %9 : vector<8x512xf32>
    %12 = math.exp %11 : vector<8x512xf32>
    %cst_6 = arith.constant 1.000000e+00 : f32
    %13 = vector.broadcast %cst_6 : f32 to vector<8x512xf32>
    %14 = arith.addf %13, %12 : vector<8x512xf32>
    %15 = math.log %14 : vector<8x512xf32>
    %16 = arith.addf %8, %15 : vector<8x512xf32>
    %cst_7 = arith.constant 0.000000e+00 : f32
    %17 = vector.broadcast %cst_7 : f32 to vector<8x512xf32>
    %18 = arith.subf %17, %16 : vector<8x512xf32>
    %cst_8 = arith.constant 0.000000e+00 : f32
    %19 = vector.broadcast %cst_8 : f32 to vector<8x512xf32>
    %20 = arith.subf %19, %3 : vector<8x512xf32>
    %21 = arith.subf %20, %16 : vector<8x512xf32>
    %cst_9 = arith.constant -9.21034049 : f32
    %cst_10 = arith.constant -1.000050e-04 : f32
    %22 = vector.broadcast %cst_9 : f32 to vector<8x512xf32>
    %23 = arith.maximumf %22, %18 : vector<8x512xf32>
    %24 = vector.broadcast %cst_10 : f32 to vector<8x512xf32>
    %25 = arith.minimumf %24, %23 : vector<8x512xf32>
    %cst_11 = arith.constant -9.21034049 : f32
    %cst_12 = arith.constant -1.000050e-04 : f32
    %26 = vector.broadcast %cst_11 : f32 to vector<8x512xf32>
    %27 = arith.maximumf %26, %21 : vector<8x512xf32>
    %28 = vector.broadcast %cst_12 : f32 to vector<8x512xf32>
    %29 = arith.minimumf %28, %27 : vector<8x512xf32>
    %30 = math.exp %18 : vector<8x512xf32>
    %cst_13 = arith.constant 9.99999974E-5 : f32
    %cst_14 = arith.constant 0.999899983 : f32
    %31 = vector.broadcast %cst_13 : f32 to vector<8x512xf32>
    %32 = arith.maximumf %31, %30 : vector<8x512xf32>
    %33 = vector.broadcast %cst_14 : f32 to vector<8x512xf32>
    %34 = arith.minimumf %33, %32 : vector<8x512xf32>
    %cst_15 = arith.constant 1.000000e+00 : f32
    %35 = vector.broadcast %cst_15 : f32 to vector<8x512xf32>
    %36 = arith.cmpf oeq, %4, %35 : vector<8x512xf32>
    %37 = arith.extui %36 : vector<8x512xi1> to vector<8x512xi32>
    %38 = arith.sitofp %37 : vector<8x512xi32> to vector<8x512xf32>
    %cst_16 = arith.constant 1.000000e+00 : f32
    %39 = vector.broadcast %cst_16 : f32 to vector<8x512xf32>
    %40 = arith.cmpf olt, %4, %39 : vector<8x512xf32>
    %41 = arith.extui %40 : vector<8x512xi1> to vector<8x512xi32>
    %42 = arith.sitofp %41 : vector<8x512xi32> to vector<8x512xf32>
    %cst_17 = arith.constant 1.000000e+00 : f32
    %43 = vector.broadcast %cst_17 : f32 to vector<8x512xf32>
    %44 = arith.subf %43, %4 : vector<8x512xf32>
    %45 = arith.mulf %44, %44 : vector<8x512xf32>
    %46 = arith.mulf %45, %45 : vector<8x512xf32>
    %cst_18 = arith.constant 1.000000e+00 : f32
    %47 = vector.broadcast %cst_18 : f32 to vector<8x512xf32>
    %48 = arith.subf %47, %34 : vector<8x512xf32>
    %49 = arith.mulf %48, %48 : vector<8x512xf32>
    %50 = arith.mulf %25, %49 : vector<8x512xf32>
    %51 = arith.mulf %50, %38 : vector<8x512xf32>
    %52 = arith.mulf %29, %34 : vector<8x512xf32>
    %53 = arith.mulf %52, %34 : vector<8x512xf32>
    %54 = arith.mulf %53, %46 : vector<8x512xf32>
    %55 = arith.mulf %54, %42 : vector<8x512xf32>
    %c0_19 = arith.constant 0 : index
    %56 = memref.load %arg4[%c0_19] : memref<3xf32, #tpu.memory_space<smem>>
    %57 = vector.shape_cast %51 : vector<8x512xf32> to vector<1x8x512xf32>
    %cst_20 = arith.constant dense<0.000000e+00> : vector<1xf32>
    %58 = vector.multi_reduction <add>, %57, %cst_20 [1, 2] : vector<1x8x512xf32> to vector<1xf32>
    %59 = vector.shape_cast %58 : vector<1xf32> to vector<1x1x1xf32>
    %60 = vector.extract %59[0, 0, 0] : f32 from vector<1x1x1xf32>
    %61 = arith.addf %56, %60 : f32
    %c0_21 = arith.constant 0 : index
    %62 = memref.load %arg4[%c0_21] : memref<3xf32, #tpu.memory_space<smem>>
    memref.store %61, %arg4[%c0_21] : memref<3xf32, #tpu.memory_space<smem>>
    %c1 = arith.constant 1 : index
    %63 = memref.load %arg4[%c1] : memref<3xf32, #tpu.memory_space<smem>>
    %64 = vector.shape_cast %55 : vector<8x512xf32> to vector<1x8x512xf32>
    %cst_22 = arith.constant dense<0.000000e+00> : vector<1xf32>
    %65 = vector.multi_reduction <add>, %64, %cst_22 [1, 2] : vector<1x8x512xf32> to vector<1xf32>
    %66 = vector.shape_cast %65 : vector<1xf32> to vector<1x1x1xf32>
    %67 = vector.extract %66[0, 0, 0] : f32 from vector<1x1x1xf32>
    %68 = arith.addf %63, %67 : f32
    %c1_23 = arith.constant 1 : index
    %69 = memref.load %arg4[%c1_23] : memref<3xf32, #tpu.memory_space<smem>>
    memref.store %68, %arg4[%c1_23] : memref<3xf32, #tpu.memory_space<smem>>
    %c2 = arith.constant 2 : index
    %70 = memref.load %arg4[%c2] : memref<3xf32, #tpu.memory_space<smem>>
    %71 = vector.shape_cast %38 : vector<8x512xf32> to vector<1x8x512xf32>
    %cst_24 = arith.constant dense<0.000000e+00> : vector<1xf32>
    %72 = vector.multi_reduction <add>, %71, %cst_24 [1, 2] : vector<1x8x512xf32> to vector<1xf32>
    %73 = vector.shape_cast %72 : vector<1xf32> to vector<1x1x1xf32>
    %74 = vector.extract %73[0, 0, 0] : f32 from vector<1x1x1xf32>
    %75 = arith.addf %70, %74 : f32
    %c2_25 = arith.constant 2 : index
    %76 = memref.load %arg4[%c2_25] : memref<3xf32, #tpu.memory_space<smem>>
    memref.store %75, %arg4[%c2_25] : memref<3xf32, #tpu.memory_space<smem>>
    %c0_i32_26 = arith.constant 0 : i32
    %77 = arith.cmpi eq, %arg0, %c0_i32_26 : i32
    %78 = arith.extui %77 : i1 to i32
    %c0_i32_27 = arith.constant 0 : i32
    %79 = arith.cmpi ne, %78, %c0_i32_27 : i32
    scf.if %79 {
      %c0_28 = arith.constant 0 : index
      %80 = memref.load %arg4[%c0_28] : memref<3xf32, #tpu.memory_space<smem>>
      %c0_29 = arith.constant 0 : index
      %81 = memref.load %arg3[%c0_29] : memref<3xf32, #tpu.memory_space<smem>>
      memref.store %80, %arg3[%c0_29] : memref<3xf32, #tpu.memory_space<smem>>
      %c1_30 = arith.constant 1 : index
      %82 = memref.load %arg4[%c1_30] : memref<3xf32, #tpu.memory_space<smem>>
      %c1_31 = arith.constant 1 : index
      %83 = memref.load %arg3[%c1_31] : memref<3xf32, #tpu.memory_space<smem>>
      memref.store %82, %arg3[%c1_31] : memref<3xf32, #tpu.memory_space<smem>>
      %c2_32 = arith.constant 2 : index
      %84 = memref.load %arg4[%c2_32] : memref<3xf32, #tpu.memory_space<smem>>
      %c2_33 = arith.constant 2 : index
      %85 = memref.load %arg3[%c2_33] : memref<3xf32, #tpu.memory_space<smem>>
      memref.store %84, %arg3[%c2_33] : memref<3xf32, #tpu.memory_space<smem>>
    } else {
    }
    return
  }
  func.func @transform_0(%arg0: i32) -> (i32, i32) {
    %c0_i32 = arith.constant 0 : i32
    %c0_i32_0 = arith.constant 0 : i32
    return %arg0, %c0_i32 : i32, i32
  }
  func.func @transform_1(%arg0: i32) -> (i32, i32) {
    %c0_i32 = arith.constant 0 : i32
    %c0_i32_0 = arith.constant 0 : i32
    return %arg0, %c0_i32 : i32, i32
  }
  func.func @transform_2(%arg0: i32) -> i32 {
    %c0_i32 = arith.constant 0 : i32
    %c0_i32_0 = arith.constant 0 : i32
    return %c0_i32 : i32
  }
}

</mosaic_0001>

<llo_original>
// kernel: tpu_custom_call.1
$region0: #{tpu_custom_call.1}
  #allocation0 [shape = 'u32[]', space=smem, size = 0x4, offset = 0x4, fixed_abs, tag = 'smem constant byte address 0x4 - core index']
  #allocation1 [shape = 'u32[72,128]{1,0:T(1,128)}', space=vmem, size = 0x9000, scoped, tag = 'internal scratch']
  #allocation2 [shape = 'f32[3]{0:T(128)}', space=smem, size = 0x200, scoped, tag = 'scratch operand']
  %s0 = inlined_call_operand.hbm [shape: f32[8,512], index: 0, kind: input, shape index: {}]
  %s1 = inlined_call_operand.hbm [shape: f32[8,512], index: 1, kind: input, shape index: {}]
  %s2 = inlined_call_operand.hbm [shape: f32[3], index: 2, kind: output, shape index: {}]
  %s3 = sld [smem:[#allocation0]]
  $region34: #{tpu_custom_call.1} parent=0
    _
  %s5 = ssub.s32 1, %s3
  %s6 = scalar_select 0, %s5, %s3
  $region1: #{tpu_custom_call.1} parent=0
    #allocation3 [shape = 'u8[16384]{0}', space=vmem, size = 0x4000, scoped, tag = 'input window, operand 0, single buffered']
    #allocation4 [shape = 's32[1]{0}', space=sflag, size = 0x4, scoped, tag = 'scoped memory for tpu_custom_call.1']
    #allocation5 [shape = 's32[1]{0}', space=sflag, size = 0x4, scoped, tag = 'scoped memory for tpu_custom_call.1']
    #allocation6 [shape = 'u8[16384]{0}', space=vmem, size = 0x4000, scoped, tag = 'input window, operand 1, single buffered']
    #allocation7 [shape = 's32[1]{0}', space=sflag, size = 0x4, scoped, tag = 'scoped memory for tpu_custom_call.1']
    #allocation8 [shape = 'u8[512]{0}', space=smem, size = 0x200, scoped, tag = 'output window, operand 0, single buffered']
    %7 = vsyncpa [#allocation4], 0
    %8 = vsyncpa [#allocation7], 0
    %9 = vsyncpa [#allocation5], 0
    // Predicated region
    $region2: #{tpu_custom_call.1} parent=1 // pred_check
      _
    $region3: #{tpu_custom_call.1} parent=1 // pred_check_branch
      %11 = sbr.rel (0) target = $region5
    $region4: #{tpu_custom_call.1} parent=1 // pred_region
      %13 = vsyncadd [#allocation4], 0
      %s15 = sshll.u32 %s0, 4
      %s16 = int_to_ptr.hbm [resolvable:$true] %s15
      %s17 = sshll.u32 [#allocation3], 4
      %s18 = int_to_ptr.vmem [resolvable:$true] %s17
      %20 = dma.hbm_to_vmem [thread:$0]  %s16, 512, %s18, [#allocation4]
    $region5: #{tpu_custom_call.1} parent=1 // pred_fallthru
      _
    // Predicated region
    $region6: #{tpu_custom_call.1} parent=1 // pred_check
      _
    $region7: #{tpu_custom_call.1} parent=1 // pred_check_branch
      %22 = sbr.rel (0) target = $region9
    $region8: #{tpu_custom_call.1} parent=1 // pred_region
      %24 = vsyncadd [#allocation7], 0
      %s26 = sshll.u32 %s1, 4
      %s27 = int_to_ptr.hbm [resolvable:$true] %s26
      %s28 = sshll.u32 [#allocation6], 4
      %s29 = int_to_ptr.vmem [resolvable:$true] %s28
      %31 = dma.hbm_to_vmem [thread:$0]  %s27, 512, %s29, [#allocation7]
    $region9: #{tpu_custom_call.1} parent=1 // pred_fallthru
      _
    // Predicated region
    $region10: #{tpu_custom_call.1} parent=1 // pred_check
      _
    $region11: #{tpu_custom_call.1} parent=1 // pred_check_branch
      %33 = sbr.rel (0) target = $region13
    $region12: #{tpu_custom_call.1} parent=1 // pred_region
      %35 = dma.done [#allocation4], 512
    $region13: #{tpu_custom_call.1} parent=1 // pred_fallthru
      _
    // Predicated region
    $region14: #{tpu_custom_call.1} parent=1 // pred_check
      _
    $region15: #{tpu_custom_call.1} parent=1 // pred_check_branch
      %37 = sbr.rel (0) target = $region17
    $region16: #{tpu_custom_call.1} parent=1 // pred_region
      %39 = dma.done [#allocation7], 512
    $region17: #{tpu_custom_call.1} parent=1 // pred_fallthru
      _
    %p40 = scmp.eq.s32.totalorder 0, 0
    // Predicated region
    $region18: #{tpu_custom_call.1} parent=1 // pred_check
      %p41 = pneg %p40
    $region19: #{tpu_custom_call.1} parent=1 // pred_check_branch
      %43 = sbr.rel (%p41) target = $region21
    $region20: #{tpu_custom_call.1} parent=1 // pred_region
      %s44 = scalar_lea.smem [#allocation2], 0
      %45 = sst [smem:[%s44]] 0.0
      %s46 = scalar_lea.smem [#allocation2], 1
      %47 = sst [smem:[%s46]] 0.0
      %s48 = scalar_lea.smem [#allocation2], 2
      %49 = sst [smem:[%s48]] 0.0
    $region21: #{tpu_custom_call.1} parent=1 // pred_fallthru
      _
    %v50 = vld [vmem:[#allocation3] sm:$0xff]
    %v51 = vld [vmem:[#allocation3 + $0x8] sm:$0xff]
    %v52 = vld [vmem:[#allocation3 + $0x10] sm:$0xff]
    %v53 = vld [vmem:[#allocation3 + $0x18] sm:$0xff]
    %v54 = vld [vmem:[#allocation6] sm:$0xff]
    %v55 = vld [vmem:[#allocation6 + $0x8] sm:$0xff]
    %v56 = vld [vmem:[#allocation6 + $0x10] sm:$0xff]
    %v57 = vld [vmem:[#allocation6 + $0x18] sm:$0xff]
    %v58 = vsub.f32 0.0, %v50
    %v59 = vsub.f32 0.0, %v51
    %v60 = vsub.f32 0.0, %v52
    %v61 = vsub.f32 0.0, %v53
    %v62 = vmax.f32 %v58, 0.0
    %v63 = vmax.f32 %v59, 0.0
    %v64 = vmax.f32 %v60, 0.0
    %v65 = vmax.f32 %v61, 0.0
    %v66 = vand.u32 2147483647, %v50
    %v67 = vand.u32 2147483647, %v51
    %v68 = vand.u32 2147483647, %v52
    %v69 = vand.u32 2147483647, %v53
    %v70 = vsub.f32 0.0, %v66
    %v71 = vsub.f32 0.0, %v67
    %v72 = vsub.f32 0.0, %v68
    %v73 = vsub.f32 0.0, %v69
    %v74 = vmul.f32 %v70, 1.442695
    %v75 = vpow.pop %v74
    %v76 = vmul.f32 %v71, 1.442695
    %v77 = vpow.pop %v76
    %v78 = vmul.f32 %v72, 1.442695
    %v79 = vpow.pop %v78
    %v80 = vmul.f32 %v73, 1.442695
    %v81 = vpow.pop %v80
    %v82 = vadd.f32 %v75, 1.0
    %v83 = vadd.f32 %v77, 1.0
    %v84 = vadd.f32 %v79, 1.0
    %v85 = vadd.f32 %v81, 1.0
    %v86 = vlog2.pop %v82
    %v87 = vmul.f32 %v86, 0.6931472
    %v88 = vlog2.pop %v83
    %v89 = vmul.f32 %v88, 0.6931472
    %v90 = vlog2.pop %v84
    %v91 = vmul.f32 %v90, 0.6931472
    %v92 = vlog2.pop %v85
    %v93 = vmul.f32 %v92, 0.6931472
    %v94 = vadd.f32 %v62, %v87
    %v95 = vadd.f32 %v63, %v89
    %v96 = vadd.f32 %v64, %v91
    %v97 = vadd.f32 %v65, %v93
    %v98 = vsub.f32 0.0, %v94
    %v99 = vsub.f32 0.0, %v95
    %v100 = vsub.f32 0.0, %v96
    %v101 = vsub.f32 0.0, %v97
    %v102 = vsub.f32 %v58, %v94
    %v103 = vsub.f32 %v59, %v95
    %v104 = vsub.f32 %v60, %v96
    %v105 = vsub.f32 %v61, %v97
    %v106 = vmax.f32 %v98, -9.2103405
    %v107 = vmax.f32 %v99, -9.2103405
    %v108 = vmax.f32 %v100, -9.2103405
    %v109 = vmax.f32 %v101, -9.2103405
    %v110 = vmin.f32 %v106, -0.000100005
    %v111 = vmin.f32 %v107, -0.000100005
    %v112 = vmin.f32 %v108, -0.000100005
    %v113 = vmin.f32 %v109, -0.000100005
    %v114 = vmax.f32 %v102, -9.2103405
    %v115 = vmax.f32 %v103, -9.2103405
    %v116 = vmax.f32 %v104, -9.2103405
    %v117 = vmax.f32 %v105, -9.2103405
    %v118 = vmin.f32 %v114, -0.000100005
    %v119 = vmin.f32 %v115, -0.000100005
    %v120 = vmin.f32 %v116, -0.000100005
    %v121 = vmin.f32 %v117, -0.000100005
    %v122 = vmul.f32 %v98, 1.442695
    %v123 = vpow.pop %v122
    %v124 = vmul.f32 %v99, 1.442695
    %v125 = vpow.pop %v124
    %v126 = vmul.f32 %v100, 1.442695
    %v127 = vpow.pop %v126
    %v128 = vmul.f32 %v101, 1.442695
    %v129 = vpow.pop %v128
    %v130 = vmax.f32 %v123, 0.0001
    %v131 = vmax.f32 %v125, 0.0001
    %v132 = vmax.f32 %v127, 0.0001
    %v133 = vmax.f32 %v129, 0.0001
    %v134 = vmin.f32 %v130, 0.9999
    %v135 = vmin.f32 %v131, 0.9999
    %v136 = vmin.f32 %v132, 0.9999
    %v137 = vmin.f32 %v133, 0.9999
    %vm138 = vcmp.eq.f32.partialorder %v54, 1.0
    %vm139 = vcmp.eq.f32.partialorder %v55, 1.0
    %vm140 = vcmp.eq.f32.partialorder %v56, 1.0
    %vm141 = vcmp.eq.f32.partialorder %v57, 1.0
    %v142 = vsel %vm138, 1, 0
    %v143 = vsel %vm139, 1, 0
    %v144 = vsel %vm140, 1, 0
    %v145 = vsel %vm141, 1, 0
    %v146 = vcvt.s32.f32 %v142
    %v147 = vcvt.s32.f32 %v143
    %v148 = vcvt.s32.f32 %v144
    %v149 = vcvt.s32.f32 %v145
    %vm150 = vcmp.lt.f32.partialorder %v54, 1.0
    %vm151 = vcmp.lt.f32.partialorder %v55, 1.0
    %vm152 = vcmp.lt.f32.partialorder %v56, 1.0
    %vm153 = vcmp.lt.f32.partialorder %v57, 1.0
    %v154 = vsel %vm150, 1, 0
    %v155 = vsel %vm151, 1, 0
    %v156 = vsel %vm152, 1, 0
    %v157 = vsel %vm153, 1, 0
    %v158 = vcvt.s32.f32 %v154
    %v159 = vcvt.s32.f32 %v155
    %v160 = vcvt.s32.f32 %v156
    %v161 = vcvt.s32.f32 %v157
    %v162 = vsub.f32 1.0, %v54
    %v163 = vsub.f32 1.0, %v55
    %v164 = vsub.f32 1.0, %v56
    %v165 = vsub.f32 1.0, %v57
    %v166 = vmul.f32 %v162, %v162
    %v167 = vmul.f32 %v163, %v163
    %v168 = vmul.f32 %v164, %v164
    %v169 = vmul.f32 %v165, %v165
    %v170 = vmul.f32 %v166, %v166
    %v171 = vmul.f32 %v167, %v167
    %v172 = vmul.f32 %v168, %v168
    %v173 = vmul.f32 %v169, %v169
    %v174 = vsub.f32 1.0, %v134
    %v175 = vsub.f32 1.0, %v135
    %v176 = vsub.f32 1.0, %v136
    %v177 = vsub.f32 1.0, %v137
    %v178 = vmul.f32 %v174, %v174
    %v179 = vmul.f32 %v175, %v175
    %v180 = vmul.f32 %v176, %v176
    %v181 = vmul.f32 %v177, %v177
    %v182 = vmul.f32 %v110, %v178
    %v183 = vmul.f32 %v111, %v179
    %v184 = vmul.f32 %v112, %v180
    %v185 = vmul.f32 %v113, %v181
    %v186 = vmul.f32 %v182, %v146
    %v187 = vmul.f32 %v183, %v147
    %v188 = vmul.f32 %v184, %v148
    %v189 = vmul.f32 %v185, %v149
    %v190 = vmul.f32 %v118, %v134
    %v191 = vmul.f32 %v119, %v135
    %v192 = vmul.f32 %v120, %v136
    %v193 = vmul.f32 %v121, %v137
    %v194 = vmul.f32 %v190, %v134
    %v195 = vmul.f32 %v191, %v135
    %v196 = vmul.f32 %v192, %v136
    %v197 = vmul.f32 %v193, %v137
    %v198 = vmul.f32 %v194, %v170
    %v199 = vmul.f32 %v195, %v171
    %v200 = vmul.f32 %v196, %v172
    %v201 = vmul.f32 %v197, %v173
    %v202 = vmul.f32 %v198, %v158
    %v203 = vmul.f32 %v199, %v159
    %v204 = vmul.f32 %v200, %v160
    %v205 = vmul.f32 %v201, %v161
    %s206 = sld [smem:[#allocation2]]
    %v207 = vadd.f32 %v186, %v187
    %v208 = vadd.f32 %v207, %v188
    %v209 = vadd.f32 %v208, %v189
    %210 = vadd.xlane.f32.xlu0 %v209
    %v211 = vpop.xlane.xlu0 %210
    %v212 = vrot.slane %v211, 4
    %v213 = vadd.f32 %v211, %v212
    %v214 = vrot.slane %v213, 2
    %v215 = vadd.f32 %v213, %v214
    %v216 = vrot.slane %v215, 1
    %v217 = vadd.f32 %v215, %v216
    %s218 = vtos %v217
    %s219 = sadd.f32 %s206, %s218
    %s220 = scalar_lea.smem [#allocation2], 0
    %221 = sst [smem:[%s220]] %s219
    %s222 = sld [smem:[#allocation2 + $0x1]]
    %v223 = vadd.f32 %v202, %v203
    %v224 = vadd.f32 %v223, %v204
    %v225 = vadd.f32 %v224, %v205
    %226 = vadd.xlane.f32.xlu0 %v225
    %v227 = vpop.xlane.xlu0 %226
    %v228 = vrot.slane %v227, 4
    %v229 = vadd.f32 %v227, %v228
    %v230 = vrot.slane %v229, 2
    %v231 = vadd.f32 %v229, %v230
    %v232 = vrot.slane %v231, 1
    %v233 = vadd.f32 %v231, %v232
    %s234 = vtos %v233
    %s235 = sadd.f32 %s222, %s234
    %s236 = scalar_lea.smem [#allocation2], 1
    %237 = sst [smem:[%s236]] %s235
    %s238 = sld [smem:[#allocation2 + $0x2]]
    %v239 = vadd.f32 %v146, %v147
    %v240 = vadd.f32 %v239, %v148
    %v241 = vadd.f32 %v240, %v149
    %242 = vadd.xlane.f32.xlu0 %v241
    %v243 = vpop.xlane.xlu0 %242
    %v244 = vrot.slane %v243, 4
    %v245 = vadd.f32 %v243, %v244
    %v246 = vrot.slane %v245, 2
    %v247 = vadd.f32 %v245, %v246
    %v248 = vrot.slane %v247, 1
    %v249 = vadd.f32 %v247, %v248
    %s250 = vtos %v249
    %s251 = sadd.f32 %s238, %s250
    %s252 = scalar_lea.smem [#allocation2], 2
    %253 = sst [smem:[%s252]] %s251
    // Predicated region
    $region22: #{tpu_custom_call.1} parent=1 // pred_check
      %p254 = pneg %p40
    $region23: #{tpu_custom_call.1} parent=1 // pred_check_branch
      %256 = sbr.rel (%p254) target = $region25
    $region24: #{tpu_custom_call.1} parent=1 // pred_region
      %s257 = sld [smem:[#allocation2]]
      %s258 = scalar_lea.smem [#allocation8], 0
      %259 = sst [smem:[%s258]] %s257
      %s260 = sld [smem:[#allocation2 + $0x1]]
      %s261 = scalar_lea.smem [#allocation8], 1
      %262 = sst [smem:[%s261]] %s260
      %s263 = sld [smem:[#allocation2 + $0x2]]
      %s264 = scalar_lea.smem [#allocation8], 2
      %265 = sst [smem:[%s264]] %s263
    $region25: #{tpu_custom_call.1} parent=1 // pred_fallthru
      _
    // Predicated region
    $region26: #{tpu_custom_call.1} parent=1 // pred_check
      _
    $region27: #{tpu_custom_call.1} parent=1 // pred_check_branch
      %267 = sbr.rel (0) target = $region29
    $region28: #{tpu_custom_call.1} parent=1 // pred_region
      %269 = vsyncadd [#allocation5], 0
      %s271 = sshll.u32 %s2, 4
      %s272 = int_to_ptr.hbm [resolvable:$true] %s271
      %274 = dma.smem_to_hbm [#allocation8], 16, %s272, [#allocation5]
    $region29: #{tpu_custom_call.1} parent=1 // pred_fallthru
      _
    // Predicated region
    $region30: #{tpu_custom_call.1} parent=1 // pred_check
      _
    $region31: #{tpu_custom_call.1} parent=1 // pred_check_branch
      %276 = sbr.rel (0) target = $region33
    $region32: #{tpu_custom_call.1} parent=1 // pred_region
      %278 = dma.done [#allocation5], 16
    $region33: #{tpu_custom_call.1} parent=1 // pred_fallthru
      _
    %279 = sfence
    %280 = vsyncpa [#allocation4], 1
    %281 = vsyncpa [#allocation7], 1
    %282 = vsyncpa [#allocation5], 1

</llo_original>
